<compile_context>
chip_gen: v7x
topology: tpu7x:2x2x1
jax: 0.10.0
libtpu: 0.0.40
codegen_flags: <defaults>
</compile_context>

<pallas_src>
import functools

import jax
import jax.numpy as jnp
from jax.experimental import pallas as pl
from jax.experimental.pallas import tpu as pltpu


def _round_up(x, m):
    return (x + m - 1) // m * m


def _make_attention_kernel(k_out: int):
    """y = params * x ; write the top-k_out values per row (descending)."""

    def kernel(p_ref, x_ref, o_ref):
        x = x_ref[...].astype(jnp.float32) * p_ref[...].astype(jnp.float32)  # (TB, F)
        f = x.shape[1]
        col = jax.lax.broadcasted_iota(jnp.int32, x.shape, dimension=1)       # (TB, F)
        out = jnp.zeros(o_ref.shape, jnp.float32)                             # (TB, K)
        out_col = jax.lax.broadcasted_iota(jnp.int32, o_ref.shape, dimension=1)

        for j in range(k_out):  # static, small -> unrolled
            m = jnp.max(x, axis=1, keepdims=True)                             # (TB, 1)
            out = jnp.where(out_col == j, m, out)
            if j + 1 < k_out:
                # Mask exactly the FIRST occurrence of the max (duplicate-safe,
                # matching torch.topk's distinct-index semantics).
                is_max = x == m
                first_idx = jnp.min(jnp.where(is_max, col, f), axis=1, keepdims=True)
                x = jnp.where(col == first_idx, -jnp.inf, x)

        o_ref[...] = out.astype(o_ref.dtype)

    return kernel


@functools.partial(jax.jit, static_argnames=("out_features", "tile_b"))
def attention_forward(params, x, *, out_features, tile_b=512):
    """params: (F,) f32, x: (B, F) f32 -> (B, out_features) f32 (descending)."""
    B, F = x.shape
    assert params.shape == (F,)
    assert 0 < out_features <= F

    # Pad only the row dimension (f32 sublane multiple of 8 / tile size).
    tb = min(_round_up(tile_b, 8), _round_up(B, 8))
    Bp = _round_up(B, tb)
    xp = jnp.pad(x, ((0, Bp - B), (0, 0)))
    p2 = params.reshape(1, F)

    grid = (Bp // tb,)
    kernel = _make_attention_kernel(out_features)

    cost = pl.CostEstimate(
        flops=Bp * F * (1 + 4 * out_features),
        transcendentals=0,
        bytes_accessed=4 * (Bp * F + F + Bp * out_features),
    )

    out = pl.pallas_call(
        kernel,
        out_shape=jax.ShapeDtypeStruct((Bp, out_features), x.dtype),
        grid_spec=pltpu.PrefetchScalarGridSpec(
            num_scalar_prefetch=0,
            grid=grid,
            in_specs=[
                pl.BlockSpec((1, F), lambda i: (0, 0)),    # params: VMEM-resident
                pl.BlockSpec((tb, F), lambda i: (i, 0)),   # x: pipelined row tiles
            ],
            out_specs=pl.BlockSpec((tb, out_features), lambda i: (i, 0)),
        ),
        compiler_params=pltpu.CompilerParams(
            dimension_semantics=("parallel",),             # shard rows across TCs (v7x)
            vmem_limit_bytes=32 * 1024 * 1024,
        ),
        cost_estimate=cost,
    )(p2, xp)
    return out[:B]


if __name__ == "__main__":
    key = jax.random.PRNGKey(0)
    k1, k2, k3, k4 = jax.random.split(key, 4)

    # Small case matching the module's forward: x is (batch, in_features).
    B, F, K = 2, 32, 8
    params = jax.random.normal(k1, (F,), jnp.float32)
    x = jax.random.normal(k2, (B, F), jnp.float32)
    y = attention_forward(params, x, out_features=K)
    jax.block_until_ready(y)
    assert y.shape == (B, K), y.shape
    ref = jax.lax.top_k(params[None, :] * x, K)[0]  # descending, like the kernel
    assert jnp.allclose(y, ref, atol=1e-5, rtol=1e-5)

    # Larger case exercising the multi-tile grid / double-buffered pipeline.
    B2, F2, K2 = 600, 256, 16
    params2 = jax.random.normal(k3, (F2,), jnp.float32)
    x2 = jax.random.normal(k4, (B2, F2), jnp.float32)
    y2 = attention_forward(params2, x2, out_features=K2, tile_b=256)
    jax.block_until_ready(y2)
    assert y2.shape == (B2, K2), y2.shape
    ref2 = jax.lax.top_k(params2[None, :] * x2, K2)[0]
    assert jnp.allclose(y2, ref2, atol=1e-5, rtol=1e-5)

    print("KERNEL_OK")
</pallas_src>

<mosaic_0001>
module attributes {stable_mosaic.version = 11 : i64} {
  func.func @kernel(%arg0: i32, %arg1: memref<1x32xf32, #tpu.memory_space<vmem>>, %arg2: memref<8x32xf32, #tpu.memory_space<vmem>>, %arg3: memref<8x8xf32, #tpu.memory_space<vmem>>) attributes {dimension_semantics = [#tpu.dimension_semantics<parallel>], iteration_bounds = array<i64: 1>, scalar_prefetch = 0 : i64, scratch_operands = 0 : i64, tpu.core_type = #tpu.core_type<tc>, window_params = [{pipeline_mode = #tpu.pipeline_mode<synchronous>, transform_indices = @transform_0, window_bounds = array<i64: 1, 32>}, {transform_indices = @transform_1, window_bounds = array<i64: 8, 32>}, {transform_indices = @transform_2, window_bounds = array<i64: 8, 8>}]} {
    %c0 = arith.constant 0 : index
    %c0_0 = arith.constant 0 : index
    %0 = vector.load %arg2[%c0, %c0_0] : memref<8x32xf32, #tpu.memory_space<vmem>>, vector<8x32xf32>
    %c0_1 = arith.constant 0 : index
    %c0_2 = arith.constant 0 : index
    %1 = vector.load %arg1[%c0_1, %c0_2] : memref<1x32xf32, #tpu.memory_space<vmem>>, vector<1x32xf32>
    %2 = vector.broadcast %1 : vector<1x32xf32> to vector<8x32xf32>
    %3 = arith.mulf %0, %2 : vector<8x32xf32>
    %4 = tpu.iota {dimensions = array<i32: 1>} : vector<8x32xi32>
    %cst = arith.constant 0.000000e+00 : f32
    %5 = vector.broadcast %cst : f32 to vector<8x8xf32>
    %6 = tpu.iota {dimensions = array<i32: 1>} : vector<8x8xi32>
    %cst_3 = arith.constant dense<0xFF800000> : vector<8xf32>
    %7 = vector.multi_reduction <maximumf>, %3, %cst_3 [1] : vector<8x32xf32> to vector<8xf32>
    %8 = vector.shape_cast %7 : vector<8xf32> to vector<8x1xf32>
    %c0_i32 = arith.constant 0 : i32
    %9 = vector.broadcast %c0_i32 : i32 to vector<8x8xi32>
    %10 = arith.cmpi eq, %6, %9 : vector<8x8xi32>
    %11 = vector.shape_cast %8 : vector<8x1xf32> to vector<8x1xf32>
    %12 = vector.broadcast %11 : vector<8x1xf32> to vector<8x8xf32>
    %13 = arith.select %10, %12, %5 : vector<8x8xi1>, vector<8x8xf32>
    %14 = vector.broadcast %8 : vector<8x1xf32> to vector<8x32xf32>
    %15 = arith.cmpf oeq, %3, %14 : vector<8x32xf32>
    %c32_i32 = arith.constant 32 : i32
    %16 = vector.broadcast %c32_i32 : i32 to vector<8x32xi32>
    %17 = arith.select %15, %4, %16 : vector<8x32xi1>, vector<8x32xi32>
    %cst_4 = arith.constant dense<2147483647> : vector<8xi32>
    %18 = vector.multi_reduction <minsi>, %17, %cst_4 [1] : vector<8x32xi32> to vector<8xi32>
    %19 = vector.shape_cast %18 : vector<8xi32> to vector<8x1xi32>
    %20 = vector.broadcast %19 : vector<8x1xi32> to vector<8x32xi32>
    %21 = arith.cmpi eq, %4, %20 : vector<8x32xi32>
    %cst_5 = arith.constant 0xFF800000 : f32
    %22 = vector.broadcast %cst_5 : f32 to vector<8x32xf32>
    %23 = arith.select %21, %22, %3 : vector<8x32xi1>, vector<8x32xf32>
    %cst_6 = arith.constant dense<0xFF800000> : vector<8xf32>
    %24 = vector.multi_reduction <maximumf>, %23, %cst_6 [1] : vector<8x32xf32> to vector<8xf32>
    %25 = vector.shape_cast %24 : vector<8xf32> to vector<8x1xf32>
    %c1_i32 = arith.constant 1 : i32
    %26 = vector.broadcast %c1_i32 : i32 to vector<8x8xi32>
    %27 = arith.cmpi eq, %6, %26 : vector<8x8xi32>
    %28 = vector.shape_cast %25 : vector<8x1xf32> to vector<8x1xf32>
    %29 = vector.broadcast %28 : vector<8x1xf32> to vector<8x8xf32>
    %30 = arith.select %27, %29, %13 : vector<8x8xi1>, vector<8x8xf32>
    %31 = vector.broadcast %25 : vector<8x1xf32> to vector<8x32xf32>
    %32 = arith.cmpf oeq, %23, %31 : vector<8x32xf32>
    %c32_i32_7 = arith.constant 32 : i32
    %33 = vector.broadcast %c32_i32_7 : i32 to vector<8x32xi32>
    %34 = arith.select %32, %4, %33 : vector<8x32xi1>, vector<8x32xi32>
    %cst_8 = arith.constant dense<2147483647> : vector<8xi32>
    %35 = vector.multi_reduction <minsi>, %34, %cst_8 [1] : vector<8x32xi32> to vector<8xi32>
    %36 = vector.shape_cast %35 : vector<8xi32> to vector<8x1xi32>
    %37 = vector.broadcast %36 : vector<8x1xi32> to vector<8x32xi32>
    %38 = arith.cmpi eq, %4, %37 : vector<8x32xi32>
    %cst_9 = arith.constant 0xFF800000 : f32
    %39 = vector.broadcast %cst_9 : f32 to vector<8x32xf32>
    %40 = arith.select %38, %39, %23 : vector<8x32xi1>, vector<8x32xf32>
    %cst_10 = arith.constant dense<0xFF800000> : vector<8xf32>
    %41 = vector.multi_reduction <maximumf>, %40, %cst_10 [1] : vector<8x32xf32> to vector<8xf32>
    %42 = vector.shape_cast %41 : vector<8xf32> to vector<8x1xf32>
    %c2_i32 = arith.constant 2 : i32
    %43 = vector.broadcast %c2_i32 : i32 to vector<8x8xi32>
    %44 = arith.cmpi eq, %6, %43 : vector<8x8xi32>
    %45 = vector.shape_cast %42 : vector<8x1xf32> to vector<8x1xf32>
    %46 = vector.broadcast %45 : vector<8x1xf32> to vector<8x8xf32>
    %47 = arith.select %44, %46, %30 : vector<8x8xi1>, vector<8x8xf32>
    %48 = vector.broadcast %42 : vector<8x1xf32> to vector<8x32xf32>
    %49 = arith.cmpf oeq, %40, %48 : vector<8x32xf32>
    %c32_i32_11 = arith.constant 32 : i32
    %50 = vector.broadcast %c32_i32_11 : i32 to vector<8x32xi32>
    %51 = arith.select %49, %4, %50 : vector<8x32xi1>, vector<8x32xi32>
    %cst_12 = arith.constant dense<2147483647> : vector<8xi32>
    %52 = vector.multi_reduction <minsi>, %51, %cst_12 [1] : vector<8x32xi32> to vector<8xi32>
    %53 = vector.shape_cast %52 : vector<8xi32> to vector<8x1xi32>
    %54 = vector.broadcast %53 : vector<8x1xi32> to vector<8x32xi32>
    %55 = arith.cmpi eq, %4, %54 : vector<8x32xi32>
    %cst_13 = arith.constant 0xFF800000 : f32
    %56 = vector.broadcast %cst_13 : f32 to vector<8x32xf32>
    %57 = arith.select %55, %56, %40 : vector<8x32xi1>, vector<8x32xf32>
    %cst_14 = arith.constant dense<0xFF800000> : vector<8xf32>
    %58 = vector.multi_reduction <maximumf>, %57, %cst_14 [1] : vector<8x32xf32> to vector<8xf32>
    %59 = vector.shape_cast %58 : vector<8xf32> to vector<8x1xf32>
    %c3_i32 = arith.constant 3 : i32
    %60 = vector.broadcast %c3_i32 : i32 to vector<8x8xi32>
    %61 = arith.cmpi eq, %6, %60 : vector<8x8xi32>
    %62 = vector.shape_cast %59 : vector<8x1xf32> to vector<8x1xf32>
    %63 = vector.broadcast %62 : vector<8x1xf32> to vector<8x8xf32>
    %64 = arith.select %61, %63, %47 : vector<8x8xi1>, vector<8x8xf32>
    %65 = vector.broadcast %59 : vector<8x1xf32> to vector<8x32xf32>
    %66 = arith.cmpf oeq, %57, %65 : vector<8x32xf32>
    %c32_i32_15 = arith.constant 32 : i32
    %67 = vector.broadcast %c32_i32_15 : i32 to vector<8x32xi32>
    %68 = arith.select %66, %4, %67 : vector<8x32xi1>, vector<8x32xi32>
    %cst_16 = arith.constant dense<2147483647> : vector<8xi32>
    %69 = vector.multi_reduction <minsi>, %68, %cst_16 [1] : vector<8x32xi32> to vector<8xi32>
    %70 = vector.shape_cast %69 : vector<8xi32> to vector<8x1xi32>
    %71 = vector.broadcast %70 : vector<8x1xi32> to vector<8x32xi32>
    %72 = arith.cmpi eq, %4, %71 : vector<8x32xi32>
    %cst_17 = arith.constant 0xFF800000 : f32
    %73 = vector.broadcast %cst_17 : f32 to vector<8x32xf32>
    %74 = arith.select %72, %73, %57 : vector<8x32xi1>, vector<8x32xf32>
    %cst_18 = arith.constant dense<0xFF800000> : vector<8xf32>
    %75 = vector.multi_reduction <maximumf>, %74, %cst_18 [1] : vector<8x32xf32> to vector<8xf32>
    %76 = vector.shape_cast %75 : vector<8xf32> to vector<8x1xf32>
    %c4_i32 = arith.constant 4 : i32
    %77 = vector.broadcast %c4_i32 : i32 to vector<8x8xi32>
    %78 = arith.cmpi eq, %6, %77 : vector<8x8xi32>
    %79 = vector.shape_cast %76 : vector<8x1xf32> to vector<8x1xf32>
    %80 = vector.broadcast %79 : vector<8x1xf32> to vector<8x8xf32>
    %81 = arith.select %78, %80, %64 : vector<8x8xi1>, vector<8x8xf32>
    %82 = vector.broadcast %76 : vector<8x1xf32> to vector<8x32xf32>
    %83 = arith.cmpf oeq, %74, %82 : vector<8x32xf32>
    %c32_i32_19 = arith.constant 32 : i32
    %84 = vector.broadcast %c32_i32_19 : i32 to vector<8x32xi32>
    %85 = arith.select %83, %4, %84 : vector<8x32xi1>, vector<8x32xi32>
    %cst_20 = arith.constant dense<2147483647> : vector<8xi32>
    %86 = vector.multi_reduction <minsi>, %85, %cst_20 [1] : vector<8x32xi32> to vector<8xi32>
    %87 = vector.shape_cast %86 : vector<8xi32> to vector<8x1xi32>
    %88 = vector.broadcast %87 : vector<8x1xi32> to vector<8x32xi32>
    %89 = arith.cmpi eq, %4, %88 : vector<8x32xi32>
    %cst_21 = arith.constant 0xFF800000 : f32
    %90 = vector.broadcast %cst_21 : f32 to vector<8x32xf32>
    %91 = arith.select %89, %90, %74 : vector<8x32xi1>, vector<8x32xf32>
    %cst_22 = arith.constant dense<0xFF800000> : vector<8xf32>
    %92 = vector.multi_reduction <maximumf>, %91, %cst_22 [1] : vector<8x32xf32> to vector<8xf32>
    %93 = vector.shape_cast %92 : vector<8xf32> to vector<8x1xf32>
    %c5_i32 = arith.constant 5 : i32
    %94 = vector.broadcast %c5_i32 : i32 to vector<8x8xi32>
    %95 = arith.cmpi eq, %6, %94 : vector<8x8xi32>
    %96 = vector.shape_cast %93 : vector<8x1xf32> to vector<8x1xf32>
    %97 = vector.broadcast %96 : vector<8x1xf32> to vector<8x8xf32>
    %98 = arith.select %95, %97, %81 : vector<8x8xi1>, vector<8x8xf32>
    %99 = vector.broadcast %93 : vector<8x1xf32> to vector<8x32xf32>
    %100 = arith.cmpf oeq, %91, %99 : vector<8x32xf32>
    %c32_i32_23 = arith.constant 32 : i32
    %101 = vector.broadcast %c32_i32_23 : i32 to vector<8x32xi32>
    %102 = arith.select %100, %4, %101 : vector<8x32xi1>, vector<8x32xi32>
    %cst_24 = arith.constant dense<2147483647> : vector<8xi32>
    %103 = vector.multi_reduction <minsi>, %102, %cst_24 [1] : vector<8x32xi32> to vector<8xi32>
    %104 = vector.shape_cast %103 : vector<8xi32> to vector<8x1xi32>
    %105 = vector.broadcast %104 : vector<8x1xi32> to vector<8x32xi32>
    %106 = arith.cmpi eq, %4, %105 : vector<8x32xi32>
    %cst_25 = arith.constant 0xFF800000 : f32
    %107 = vector.broadcast %cst_25 : f32 to vector<8x32xf32>
    %108 = arith.select %106, %107, %91 : vector<8x32xi1>, vector<8x32xf32>
    %cst_26 = arith.constant dense<0xFF800000> : vector<8xf32>
    %109 = vector.multi_reduction <maximumf>, %108, %cst_26 [1] : vector<8x32xf32> to vector<8xf32>
    %110 = vector.shape_cast %109 : vector<8xf32> to vector<8x1xf32>
    %c6_i32 = arith.constant 6 : i32
    %111 = vector.broadcast %c6_i32 : i32 to vector<8x8xi32>
    %112 = arith.cmpi eq, %6, %111 : vector<8x8xi32>
    %113 = vector.shape_cast %110 : vector<8x1xf32> to vector<8x1xf32>
    %114 = vector.broadcast %113 : vector<8x1xf32> to vector<8x8xf32>
    %115 = arith.select %112, %114, %98 : vector<8x8xi1>, vector<8x8xf32>
    %116 = vector.broadcast %110 : vector<8x1xf32> to vector<8x32xf32>
    %117 = arith.cmpf oeq, %108, %116 : vector<8x32xf32>
    %c32_i32_27 = arith.constant 32 : i32
    %118 = vector.broadcast %c32_i32_27 : i32 to vector<8x32xi32>
    %119 = arith.select %117, %4, %118 : vector<8x32xi1>, vector<8x32xi32>
    %cst_28 = arith.constant dense<2147483647> : vector<8xi32>
    %120 = vector.multi_reduction <minsi>, %119, %cst_28 [1] : vector<8x32xi32> to vector<8xi32>
    %121 = vector.shape_cast %120 : vector<8xi32> to vector<8x1xi32>
    %122 = vector.broadcast %121 : vector<8x1xi32> to vector<8x32xi32>
    %123 = arith.cmpi eq, %4, %122 : vector<8x32xi32>
    %cst_29 = arith.constant 0xFF800000 : f32
    %124 = vector.broadcast %cst_29 : f32 to vector<8x32xf32>
    %125 = arith.select %123, %124, %108 : vector<8x32xi1>, vector<8x32xf32>
    %cst_30 = arith.constant dense<0xFF800000> : vector<8xf32>
    %126 = vector.multi_reduction <maximumf>, %125, %cst_30 [1] : vector<8x32xf32> to vector<8xf32>
    %127 = vector.shape_cast %126 : vector<8xf32> to vector<8x1xf32>
    %c7_i32 = arith.constant 7 : i32
    %128 = vector.broadcast %c7_i32 : i32 to vector<8x8xi32>
    %129 = arith.cmpi eq, %6, %128 : vector<8x8xi32>
    %130 = vector.shape_cast %127 : vector<8x1xf32> to vector<8x1xf32>
    %131 = vector.broadcast %130 : vector<8x1xf32> to vector<8x8xf32>
    %132 = arith.select %129, %131, %115 : vector<8x8xi1>, vector<8x8xf32>
    %c0_31 = arith.constant 0 : index
    %c0_32 = arith.constant 0 : index
    %133 = vector.load %arg3[%c0_31, %c0_32] : memref<8x8xf32, #tpu.memory_space<vmem>>, vector<8x8xf32>
    tpu.vector_store %arg3[%c0_31, %c0_32], %132 {strides = array<i32>} : memref<8x8xf32, #tpu.memory_space<vmem>>, vector<8x8xf32>,
    return
  }
  func.func @transform_0(%arg0: i32) -> (i32, i32) {
    %c0_i32 = arith.constant 0 : i32
    %c0_i32_0 = arith.constant 0 : i32
    %c0_i32_1 = arith.constant 0 : i32
    return %c0_i32, %c0_i32_0 : i32, i32
  }
  func.func @transform_1(%arg0: i32) -> (i32, i32) {
    %c0_i32 = arith.constant 0 : i32
    %c0_i32_0 = arith.constant 0 : i32
    return %arg0, %c0_i32 : i32, i32
  }
  func.func @transform_2(%arg0: i32) -> (i32, i32) {
    %c0_i32 = arith.constant 0 : i32
    %c0_i32_0 = arith.constant 0 : i32
    return %arg0, %c0_i32 : i32, i32
  }
}

</mosaic_0001>

<llo_original>
// kernel: attention_forward.1
$region0: #{attention_forward.1}
  #allocation0 [shape = 'u32[]', space=smem, size = 0x4, offset = 0x4, fixed_abs, tag = 'smem constant byte address 0x4 - core index']
  #allocation1 [shape = 'u32[144,128]{1,0:T(1,128)}', space=vmem, size = 0x12000, scoped, tag = 'internal scratch']
  %s0 = inlined_call_operand.vmem [shape: f32[1,32], index: 0, kind: input, shape index: {}]
  %s1 = inlined_call_operand.vmem [shape: f32[8,32], index: 1, kind: input, shape index: {}]
  %s2 = inlined_call_operand.vmem [shape: f32[8,8], index: 2, kind: output, shape index: {}]
  %s3 = sld [smem:[#allocation0]]
  $region18: #{attention_forward.1} parent=0
    _
  %s5 = ssub.s32 1, %s3
  %s6 = scalar_select 0, %s5, %s3
  // Predicated region
  $region2: #{attention_forward.1} parent=0 // pred_check
    _
  $region3: #{attention_forward.1} parent=0 // pred_check_branch
    %8 = sbr.rel (0) target = $region5
  $region4: #{attention_forward.1} parent=0 // pred_region
    _
  $region5: #{attention_forward.1} parent=0 // pred_fallthru
    _
  // Predicated region
  $region6: #{attention_forward.1} parent=0 // pred_check
    _
  $region7: #{attention_forward.1} parent=0 // pred_check_branch
    %10 = sbr.rel (0) target = $region9
  $region8: #{attention_forward.1} parent=0 // pred_region
    _
  $region9: #{attention_forward.1} parent=0 // pred_fallthru
    _
  %v11 = vld [vmem:[%s1] sm:$0xff]
  %v12 = vld [vmem:[%s0] sm:$0x1]
  %v14 = vlaneseq
  %v15 = vshrl.u32 %v14, 7
  %v16 = vsub.s32 0, %v15
  %v17 = vrot.slane %v12, %v16
  %v19 = vmul.f32 %v11, %v17
  %v20 = vlaneseq
  %v21 = vand.u32 %v20, 127
  %vm22 = vcmask 261120
  %v23 = vsel %vm22, %v19, -inf
  %24 = vmax.xlane.f32.xlu0 %v23
  %v25 = vpop.xlane.xlu0 %24
  %vm26 = vcmp.eq.s32.totalorder %v21, 0
  %v27 = vsel %vm26, %v25, 0.0
  %vm28 = vcmp.eq.f32.partialorder %v19, %v25
  %v29 = vsel %vm28, %v21, 32
  %v30 = vsel %vm22, %v29, 2147483647
  %v31 = vand.u32 %v30, 65535
  %v32 = vshra.s32 %v30, 16
  %v33 = vcvt.s32.f32 %v31
  %v34 = vcvt.s32.f32 %v32
  %35 = vmin.xlane.f32.xlu0 %v34
  %v36 = vpop.xlane.xlu0 %35
  %vm37 = vcmp.eq.f32.partialorder %v34, %v36
  %v38 = vsel %vm37, %v33, inf
  %39 = vmin.xlane.f32.xlu0 %v38
  %v40 = vpop.xlane.xlu0 %39
  %v41 = vcvt.f32.s32 %v40
  %v42 = vcvt.f32.s32 %v36
  %v43 = vshll.u32 %v42, 16
  %v44 = vadd.s32 %v43, %v41
  %vm45 = vcmp.eq.s32.totalorder %v21, %v44
  %v46 = vsel %vm45, -inf, %v19
  %v47 = vsel %vm22, %v46, -inf
  %48 = vmax.xlane.f32.xlu0 %v47
  %v49 = vpop.xlane.xlu0 %48
  %vm50 = vcmp.eq.s32.totalorder %v21, 1
  %v51 = vsel %vm50, %v49, %v27
  %vm52 = vcmp.eq.f32.partialorder %v46, %v49
  %v53 = vsel %vm52, %v21, 32
  %v54 = vsel %vm22, %v53, 2147483647
  %v55 = vand.u32 %v54, 65535
  %v56 = vshra.s32 %v54, 16
  %v57 = vcvt.s32.f32 %v55
  %v58 = vcvt.s32.f32 %v56
  %59 = vmin.xlane.f32.xlu0 %v58
  %v60 = vpop.xlane.xlu0 %59
  %vm61 = vcmp.eq.f32.partialorder %v58, %v60
  %v62 = vsel %vm61, %v57, inf
  %63 = vmin.xlane.f32.xlu0 %v62
  %v64 = vpop.xlane.xlu0 %63
  %v65 = vcvt.f32.s32 %v64
  %v66 = vcvt.f32.s32 %v60
  %v67 = vshll.u32 %v66, 16
  %v68 = vadd.s32 %v67, %v65
  %vm69 = vcmp.eq.s32.totalorder %v21, %v68
  %v70 = vsel %vm69, -inf, %v46
  %v71 = vsel %vm22, %v70, -inf
  %72 = vmax.xlane.f32.xlu0 %v71
  %v73 = vpop.xlane.xlu0 %72
  %vm74 = vcmp.eq.s32.totalorder %v21, 2
  %v75 = vsel %vm74, %v73, %v51
  %vm76 = vcmp.eq.f32.partialorder %v70, %v73
  %v77 = vsel %vm76, %v21, 32
  %v78 = vsel %vm22, %v77, 2147483647
  %v79 = vand.u32 %v78, 65535
  %v80 = vshra.s32 %v78, 16
  %v81 = vcvt.s32.f32 %v79
  %v82 = vcvt.s32.f32 %v80
  %83 = vmin.xlane.f32.xlu0 %v82
  %v84 = vpop.xlane.xlu0 %83
  %vm85 = vcmp.eq.f32.partialorder %v82, %v84
  %v86 = vsel %vm85, %v81, inf
  %87 = vmin.xlane.f32.xlu0 %v86
  %v88 = vpop.xlane.xlu0 %87
  %v89 = vcvt.f32.s32 %v88
  %v90 = vcvt.f32.s32 %v84
  %v91 = vshll.u32 %v90, 16
  %v92 = vadd.s32 %v91, %v89
  %vm93 = vcmp.eq.s32.totalorder %v21, %v92
  %v94 = vsel %vm93, -inf, %v70
  %v95 = vsel %vm22, %v94, -inf
  %96 = vmax.xlane.f32.xlu0 %v95
  %v97 = vpop.xlane.xlu0 %96
  %vm98 = vcmp.eq.s32.totalorder %v21, 3
  %v99 = vsel %vm98, %v97, %v75
  %vm100 = vcmp.eq.f32.partialorder %v94, %v97
  %v101 = vsel %vm100, %v21, 32
  %v102 = vsel %vm22, %v101, 2147483647
  %v103 = vand.u32 %v102, 65535
  %v104 = vshra.s32 %v102, 16
  %v105 = vcvt.s32.f32 %v103
  %v106 = vcvt.s32.f32 %v104
  %107 = vmin.xlane.f32.xlu0 %v106
  %v108 = vpop.xlane.xlu0 %107
  %vm109 = vcmp.eq.f32.partialorder %v106, %v108
  %v110 = vsel %vm109, %v105, inf
  %111 = vmin.xlane.f32.xlu0 %v110
  %v112 = vpop.xlane.xlu0 %111
  %v113 = vcvt.f32.s32 %v112
  %v114 = vcvt.f32.s32 %v108
  %v115 = vshll.u32 %v114, 16
  %v116 = vadd.s32 %v115, %v113
  %vm117 = vcmp.eq.s32.totalorder %v21, %v116
  %v118 = vsel %vm117, -inf, %v94
  %v119 = vsel %vm22, %v118, -inf
  %120 = vmax.xlane.f32.xlu0 %v119
  %v121 = vpop.xlane.xlu0 %120
  %vm122 = vcmp.eq.s32.totalorder %v21, 4
  %v123 = vsel %vm122, %v121, %v99
  %vm124 = vcmp.eq.f32.partialorder %v118, %v121
  %v125 = vsel %vm124, %v21, 32
  %v126 = vsel %vm22, %v125, 2147483647
  %v127 = vand.u32 %v126, 65535
  %v128 = vshra.s32 %v126, 16
  %v129 = vcvt.s32.f32 %v127
  %v130 = vcvt.s32.f32 %v128
  %131 = vmin.xlane.f32.xlu0 %v130
  %v132 = vpop.xlane.xlu0 %131
  %vm133 = vcmp.eq.f32.partialorder %v130, %v132
  %v134 = vsel %vm133, %v129, inf
  %135 = vmin.xlane.f32.xlu0 %v134
  %v136 = vpop.xlane.xlu0 %135
  %v137 = vcvt.f32.s32 %v136
  %v138 = vcvt.f32.s32 %v132
  %v139 = vshll.u32 %v138, 16
  %v140 = vadd.s32 %v139, %v137
  %vm141 = vcmp.eq.s32.totalorder %v21, %v140
  %v142 = vsel %vm141, -inf, %v118
  %v143 = vsel %vm22, %v142, -inf
  %144 = vmax.xlane.f32.xlu0 %v143
  %v145 = vpop.xlane.xlu0 %144
  %vm146 = vcmp.eq.s32.totalorder %v21, 5
  %v147 = vsel %vm146, %v145, %v123
  %vm148 = vcmp.eq.f32.partialorder %v142, %v145
  %v149 = vsel %vm148, %v21, 32
  %v150 = vsel %vm22, %v149, 2147483647
  %v151 = vand.u32 %v150, 65535
  %v152 = vshra.s32 %v150, 16
  %v153 = vcvt.s32.f32 %v151
  %v154 = vcvt.s32.f32 %v152
  %155 = vmin.xlane.f32.xlu0 %v154
  %v156 = vpop.xlane.xlu0 %155
  %vm157 = vcmp.eq.f32.partialorder %v154, %v156
  %v158 = vsel %vm157, %v153, inf
  %159 = vmin.xlane.f32.xlu0 %v158
  %v160 = vpop.xlane.xlu0 %159
  %v161 = vcvt.f32.s32 %v160
  %v162 = vcvt.f32.s32 %v156
  %v163 = vshll.u32 %v162, 16
  %v164 = vadd.s32 %v163, %v161
  %vm165 = vcmp.eq.s32.totalorder %v21, %v164
  %v166 = vsel %vm165, -inf, %v142
  %v167 = vsel %vm22, %v166, -inf
  %168 = vmax.xlane.f32.xlu0 %v167
  %v169 = vpop.xlane.xlu0 %168
  %vm170 = vcmp.eq.s32.totalorder %v21, 6
  %v171 = vsel %vm170, %v169, %v147
  %vm172 = vcmp.eq.f32.partialorder %v166, %v169
  %v173 = vsel %vm172, %v21, 32
  %v174 = vsel %vm22, %v173, 2147483647
  %v175 = vand.u32 %v174, 65535
  %v176 = vshra.s32 %v174, 16
  %v177 = vcvt.s32.f32 %v175
  %v178 = vcvt.s32.f32 %v176
  %179 = vmin.xlane.f32.xlu0 %v178
  %v180 = vpop.xlane.xlu0 %179
  %vm181 = vcmp.eq.f32.partialorder %v178, %v180
  %v182 = vsel %vm181, %v177, inf
  %183 = vmin.xlane.f32.xlu0 %v182
  %v184 = vpop.xlane.xlu0 %183
  %v185 = vcvt.f32.s32 %v184
  %v186 = vcvt.f32.s32 %v180
  %v187 = vshll.u32 %v186, 16
  %v188 = vadd.s32 %v187, %v185
  %vm189 = vcmp.eq.s32.totalorder %v21, %v188
  %v190 = vsel %vm189, -inf, %v166
  %v191 = vsel %vm22, %v190, -inf
  %192 = vmax.xlane.f32.xlu0 %v191
  %v193 = vpop.xlane.xlu0 %192
  %vm194 = vcmp.eq.s32.totalorder %v21, 7
  %v195 = vsel %vm194, %v193, %v171
  %vm196 = vcmask 64512
  %197 = vst.msk [vmem:[%s2] sm:$0xff] %vm196, %v195
  // Predicated region
  $region10: #{attention_forward.1} parent=0 // pred_check
    _
  $region11: #{attention_forward.1} parent=0 // pred_check_branch
    %199 = sbr.rel (0) target = $region13
  $region12: #{attention_forward.1} parent=0 // pred_region
    _
  $region13: #{attention_forward.1} parent=0 // pred_fallthru
    _
  // Predicated region
  $region14: #{attention_forward.1} parent=0 // pred_check
    _
  $region15: #{attention_forward.1} parent=0 // pred_check_branch
    %201 = sbr.rel (0) target = $region17
  $region16: #{attention_forward.1} parent=0 // pred_region
    _
  $region17: #{attention_forward.1} parent=0 // pred_fallthru
    _

</llo_original>
